<compile_context>
chip_gen: v6e
topology: v6e:2x2x1
jax: 0.10.0
libtpu: 0.0.40
codegen_flags: <defaults>
</compile_context>

<pallas_src>
import jax
import jax.numpy as jnp
from jax.experimental import pallas as pl
from jax.experimental.pallas import tpu as pltpu


def _make_binary_tanh_kernel(n_true):
    """Kernel closure over the TRUE (unpadded) feature count."""
    inv_n = 1.0 / float(n_true)

    def kernel(x_ref, o_ref):
        x = x_ref[...]                                            # (tb, n_pad) f32
        # reweight_mean: per-batch-row mean of |x + 1e-8| over all non-batch dims.
        # Padded lanes hold -1e-8, so |pad + 1e-8| == 0 and they contribute nothing;
        # divide by the true feature count, not the padded one.
        row_sum = jnp.sum(jnp.abs(x + 1e-8), axis=-1, keepdims=True)   # (tb, 1)
        m = row_sum * inv_n
        # hardtanh -> polynomial -> clip -> BinarizeF(=sign) collapses exactly to
        # sign(x) (p = h(2 -/+ h) has the sign of h = clamp(x,-1,1), 0 -> 0), hence
        # out = (m * x) * sign(x) = m * |x|  (bit-identical to the full chain).
        o_ref[...] = m * jnp.abs(x)

    return kernel


def _choose_row_tile(b, n_pad):
    """Pick the batch tile: ~2 MiB per pipeline buffer, (8,128)-legal, grid>=2 when cheap."""
    bytes_per_row = 4 * n_pad
    target_rows = max(8, (2 * 1024 * 1024) // bytes_per_row)      # ~2 MiB blocks
    target_rows = (target_rows // 8) * 8                          # sublane multiple of 8
    if target_rows >= b:
        # Whole batch fits one block.  A single-step grid uses only one of v7x's two
        # TensorCores, so if B is large enough split it into (at least) two blocks.
        if b > 8:
            half = -(-b // 2)                                     # ceil(b / 2)
            return ((half + 7) // 8) * 8                          # multiple of 8, < b
        return b                                                  # block == full batch dim
    return target_rows


def binary_tanh(x):
    """x: (B, C, H, W) float32 -> (B, C, H, W) float32 (BinaryTanh forward, det mode)."""
    # TODO(synk): mode='stoch' (StochasticBinarizeF) and the custom BinarizeF backward
    # are not implemented; this is the default deterministic forward path only.
    b = x.shape[0]
    n = 1
    for d in x.shape[1:]:
        n *= d
    x2d = x.reshape(b, n).astype(jnp.float32)

    # Pad the flattened feature dim to a lane-dense multiple of 128 (unmasked stores).
    n_pad = ((n + 127) // 128) * 128
    if n_pad != n:
        # Pad value -1e-8: |(-1e-8) + 1e-8| == 0 exactly, so the row mean is untouched.
        x2d = jnp.pad(x2d, ((0, 0), (0, n_pad - n)), constant_values=-1e-8)

    tb = _choose_row_tile(b, n_pad)
    grid = (pl.cdiv(b, tb),)

    blk_bytes = tb * n_pad * 4
    cp_kwargs = dict(dimension_semantics=("parallel",))
    if 4 * blk_bytes > (12 << 20):
        # Very large C*H*W rows (real ResNet stems): raise the scoped VMEM limit so the
        # in/out blocks stay double-buffered.
        # TODO(synk): for huge feature dims a two-pass n-tiled structure (row-sum pass +
        # scale pass) would avoid raising the limit entirely.
        cp_kwargs["vmem_limit_bytes"] = min(4 * blk_bytes + (8 << 20), 100 << 20)

    out = pl.pallas_call(
        _make_binary_tanh_kernel(n),
        out_shape=jax.ShapeDtypeStruct((b, n_pad), jnp.float32),
        grid=grid,
        in_specs=[pl.BlockSpec((tb, n_pad), lambda i: (i, 0))],
        out_specs=pl.BlockSpec((tb, n_pad), lambda i: (i, 0)),
        compiler_params=pltpu.CompilerParams(**cp_kwargs),
        cost_estimate=pl.CostEstimate(
            flops=6 * b * n, transcendentals=0, bytes_accessed=8 * b * n),
    )(x2d)

    if n_pad != n:
        out = out[:, :n]
    return out.reshape(x.shape)


def _binary_tanh_ref(x):
    """Plain-JAX reference mirroring the full PyTorch forward (no simplification)."""
    h = jnp.clip(x, -1.0, 1.0)
    pos = jnp.where(h > 0.0, h, 0.0)
    neg = jnp.where(h < 0.0, h, 0.0)
    p = jnp.clip((2.0 * pos - pos * pos) + (2.0 * neg + neg * neg), -1.0, 1.0)
    m = jnp.mean(jnp.abs(x + 1e-8).reshape(x.shape[0], -1), axis=-1)
    m = m.reshape((x.shape[0],) + (1,) * (x.ndim - 1))
    return (m * x) * jnp.sign(p)


if __name__ == "__main__":
    key = jax.random.PRNGKey(0)
    # (batch=2, channels=4, spatial 16x16) -> flattened rows of 1024 (lane-dense).
    x = jax.random.normal(key, (2, 4, 16, 16), dtype=jnp.float32)

    out = jax.block_until_ready(binary_tanh(x))
    ref = _binary_tanh_ref(x)

    assert out.shape == x.shape, out.shape
    assert jnp.allclose(out, ref, atol=1e-5, rtol=1e-5), "mismatch vs reference"
    print("KERNEL_OK")
</pallas_src>

<mosaic_0001>
module attributes {stable_mosaic.version = 11 : i64} {
  func.func @kernel(%arg0: i32, %arg1: memref<2x1024xf32, #tpu.memory_space<vmem>>, %arg2: memref<2x1024xf32, #tpu.memory_space<vmem>>) attributes {dimension_semantics = [#tpu.dimension_semantics<parallel>], iteration_bounds = array<i64: 1>, scalar_prefetch = 0 : i64, scratch_operands = 0 : i64, tpu.core_type = #tpu.core_type<tc>, window_params = [{transform_indices = @transform_0, window_bounds = array<i64: 2, 1024>}, {transform_indices = @transform_1, window_bounds = array<i64: 2, 1024>}]} {
    %c0 = arith.constant 0 : index
    %c0_0 = arith.constant 0 : index
    %0 = vector.load %arg1[%c0, %c0_0] : memref<2x1024xf32, #tpu.memory_space<vmem>>, vector<2x1024xf32>
    %cst = arith.constant 9.99999993E-9 : f32
    %1 = vector.broadcast %cst : f32 to vector<2x1024xf32>
    %2 = arith.addf %0, %1 : vector<2x1024xf32>
    %3 = math.absf %2 : vector<2x1024xf32>
    %cst_1 = arith.constant dense<0.000000e+00> : vector<2xf32>
    %4 = vector.multi_reduction <add>, %3, %cst_1 [1] : vector<2x1024xf32> to vector<2xf32>
    %5 = vector.shape_cast %4 : vector<2xf32> to vector<2x1xf32>
    %cst_2 = arith.constant 9.765625E-4 : f32
    %6 = vector.broadcast %cst_2 : f32 to vector<2x1xf32>
    %7 = arith.mulf %5, %6 : vector<2x1xf32>
    %8 = math.absf %0 : vector<2x1024xf32>
    %9 = vector.broadcast %7 : vector<2x1xf32> to vector<2x1024xf32>
    %10 = arith.mulf %9, %8 : vector<2x1024xf32>
    %c0_3 = arith.constant 0 : index
    %c0_4 = arith.constant 0 : index
    %11 = vector.load %arg2[%c0_3, %c0_4] : memref<2x1024xf32, #tpu.memory_space<vmem>>, vector<2x1024xf32>
    tpu.vector_store %arg2[%c0_3, %c0_4], %10 {strides = array<i32>} : memref<2x1024xf32, #tpu.memory_space<vmem>>, vector<2x1024xf32>,
    return
  }
  func.func @transform_0(%arg0: i32) -> (i32, i32) {
    %c0_i32 = arith.constant 0 : i32
    %c0_i32_0 = arith.constant 0 : i32
    return %arg0, %c0_i32 : i32, i32
  }
  func.func @transform_1(%arg0: i32) -> (i32, i32) {
    %c0_i32 = arith.constant 0 : i32
    %c0_i32_0 = arith.constant 0 : i32
    return %arg0, %c0_i32 : i32, i32
  }
}

</mosaic_0001>

<llo_original>
// kernel: tpu_custom_call.1
$region0: #{tpu_custom_call.1}
  #allocation0 [shape = 'u32[]', space=smem, size = 0x4, offset = 0x4, fixed_abs, tag = 'smem constant byte address 0x4 - core index']
  #allocation1 [shape = 'u32[144,128]{1,0:T(1,128)}', space=vmem, size = 0x12000, scoped, tag = 'internal scratch']
  %s0 = inlined_call_operand.hbm [shape: f32[2,1024], index: 0, kind: input, shape index: {}]
  %s1 = inlined_call_operand.hbm [shape: f32[2,1024], index: 1, kind: output, shape index: {}]
  %s2 = sld [smem:[#allocation0]]
  $region18: #{tpu_custom_call.1} parent=0
    _
  %s4 = ssub.s32 1, %s2
  %s5 = scalar_select 0, %s4, %s2
  $region1: #{tpu_custom_call.1} parent=0
    #allocation2 [shape = 'u8[8192]{0}', space=vmem, size = 0x2000, scoped, tag = 'input window, operand 0, single buffered']
    #allocation3 [shape = 's32[1]{0}', space=sflag, size = 0x4, scoped, tag = 'scoped memory for tpu_custom_call.1']
    #allocation4 [shape = 's32[1]{0}', space=sflag, size = 0x4, scoped, tag = 'scoped memory for tpu_custom_call.1']
    #allocation5 [shape = 'u8[8192]{0}', space=vmem, size = 0x2000, scoped, tag = 'output window, operand 0, single buffered']
    %6 = vsyncpa [#allocation3], 0
    %7 = vsyncpa [#allocation4], 0
    // Predicated region
    $region2: #{tpu_custom_call.1} parent=1 // pred_check
      _
    $region3: #{tpu_custom_call.1} parent=1 // pred_check_branch
      %9 = sbr.rel (0) target = $region5
    $region4: #{tpu_custom_call.1} parent=1 // pred_region
      %s11 = ssub.s32 256, 256
      %12 = vsyncadd [#allocation3], %s11
      %s14 = sshll.u32 [#allocation2], 4
      %s15 = int_to_ptr.vmem [resolvable:$true] %s14
      %17 = dma.hbm_to_vmem [thread:$0]  %s0, 256, %s15, [#allocation3]
    $region5: #{tpu_custom_call.1} parent=1 // pred_fallthru
      _
    // Predicated region
    $region6: #{tpu_custom_call.1} parent=1 // pred_check
      _
    $region7: #{tpu_custom_call.1} parent=1 // pred_check_branch
      %19 = sbr.rel (0) target = $region9
    $region8: #{tpu_custom_call.1} parent=1 // pred_region
      %20 = dma.done [#allocation3], 256
    $region9: #{tpu_custom_call.1} parent=1 // pred_fallthru
      _
    %v21 = vld [vmem:[#allocation2] sm:$0xff]
    %v22 = vld [vmem:[#allocation2 + $0x8] sm:$0xff]
    %v23 = vadd.f32 %v21, 1e-08
    %v24 = vadd.f32 %v22, 1e-08
    %v25 = vand.u32 2147483647, %v23
    %v26 = vand.u32 2147483647, %v24
    %v29 = vcombine.high %v25, %v25
    %v31 = vunpack.c.l.s4 1983009808
    %v32 = vunpack.c.0.s8 %v31
    %v33 = vlaneseq
    %v34 = vshrl.u32 %v33, 7
    %v35 = vsub.s32 %v32, %v34
    %v36 = vrot.slane %v25, %v35
    %v38 = vunpack.c.l.s4 1983009808
    %v39 = vunpack.c.0.s8 %v38
    %v40 = vlaneseq
    %v41 = vshrl.u32 %v40, 7
    %v42 = vsub.s32 %v39, %v41
    %v43 = vrot.slane %v29, %v42
    %v44 = vcombine.high %v36, %v36
    %v45 = vcombine.high %v43, %v43
    %v46 = vcombine.high %v26, %v26
    %v48 = vunpack.c.l.s4 1983009808
    %v49 = vunpack.c.0.s8 %v48
    %v50 = vlaneseq
    %v51 = vshrl.u32 %v50, 7
    %v52 = vsub.s32 %v49, %v51
    %v53 = vrot.slane %v26, %v52
    %v55 = vunpack.c.l.s4 1983009808
    %v56 = vunpack.c.0.s8 %v55
    %v57 = vlaneseq
    %v58 = vshrl.u32 %v57, 7
    %v59 = vsub.s32 %v56, %v58
    %v60 = vrot.slane %v46, %v59
    %v61 = vcombine.high %v53, %v53
    %v62 = vcombine.high %v60, %v60
    %vm71 = vcmask 1041408
    %v72 = vsel %vm71, %v36, 0.0
    %v73 = vsel %vm71, %v44, 0.0
    %v74 = vadd.f32 %v72, %v73
    %v75 = vsel %vm71, %v43, 0.0
    %v76 = vadd.f32 %v74, %v75
    %v77 = vsel %vm71, %v45, 0.0
    %v78 = vadd.f32 %v76, %v77
    %v79 = vsel %vm71, %v53, 0.0
    %v80 = vadd.f32 %v78, %v79
    %v81 = vsel %vm71, %v61, 0.0
    %v82 = vadd.f32 %v80, %v81
    %v83 = vsel %vm71, %v60, 0.0
    %v84 = vadd.f32 %v82, %v83
    %v85 = vsel %vm71, %v62, 0.0
    %v86 = vadd.f32 %v84, %v85
    %87 = vadd.xlane.f32.xlu0 %v86
    %v88 = vpop.xlane.xlu0 %87
    %v89 = vmul.f32 %v88, 0.0009765625
    %v90 = vand.u32 2147483647, %v21
    %v91 = vand.u32 2147483647, %v22
    %v94 = vcombine.high %v90, %v90
    %v96 = vunpack.c.l.s4 1983009808
    %v97 = vunpack.c.0.s8 %v96
    %v98 = vlaneseq
    %v99 = vshrl.u32 %v98, 7
    %v100 = vsub.s32 %v97, %v99
    %v101 = vrot.slane %v90, %v100
    %v103 = vunpack.c.l.s4 1983009808
    %v104 = vunpack.c.0.s8 %v103
    %v105 = vlaneseq
    %v106 = vshrl.u32 %v105, 7
    %v107 = vsub.s32 %v104, %v106
    %v108 = vrot.slane %v94, %v107
    %v109 = vcombine.high %v101, %v101
    %v110 = vcombine.high %v108, %v108
    %v111 = vcombine.high %v91, %v91
    %v113 = vunpack.c.l.s4 1983009808
    %v114 = vunpack.c.0.s8 %v113
    %v115 = vlaneseq
    %v116 = vshrl.u32 %v115, 7
    %v117 = vsub.s32 %v114, %v116
    %v118 = vrot.slane %v91, %v117
    %v120 = vunpack.c.l.s4 1983009808
    %v121 = vunpack.c.0.s8 %v120
    %v122 = vlaneseq
    %v123 = vshrl.u32 %v122, 7
    %v124 = vsub.s32 %v121, %v123
    %v125 = vrot.slane %v111, %v124
    %v126 = vcombine.high %v118, %v118
    %v127 = vcombine.high %v125, %v125
    %v136 = vmul.f32 %v89, %v101
    %v137 = vmul.f32 %v89, %v109
    %v138 = vmul.f32 %v89, %v108
    %v139 = vmul.f32 %v89, %v110
    %v140 = vmul.f32 %v89, %v118
    %v141 = vmul.f32 %v89, %v126
    %v142 = vmul.f32 %v89, %v125
    %v143 = vmul.f32 %v89, %v127
    %v152 = vcombine.low %v136, %v137
    %v153 = vcombine.low %v138, %v139
    %v155 = vunpack.c.l.s4 1983009808
    %v156 = vunpack.c.0.s8 %v155
    %v157 = vlaneseq
    %v158 = vshrl.u32 %v157, 7
    %v159 = vsub.s32 %v156, %v158
    %v160 = vrot.slane %v152, %v159
    %v162 = vunpack.c.l.s4 1983009808
    %v163 = vunpack.c.0.s8 %v162
    %v164 = vlaneseq
    %v165 = vshrl.u32 %v164, 7
    %v166 = vsub.s32 %v163, %v165
    %v167 = vrot.slane %v153, %v166
    %v168 = vcombine.low %v160, %v167
    %v169 = vcombine.low %v140, %v141
    %v170 = vcombine.low %v142, %v143
    %v172 = vunpack.c.l.s4 1983009808
    %v173 = vunpack.c.0.s8 %v172
    %v174 = vlaneseq
    %v175 = vshrl.u32 %v174, 7
    %v176 = vsub.s32 %v173, %v175
    %v177 = vrot.slane %v169, %v176
    %v179 = vunpack.c.l.s4 1983009808
    %v180 = vunpack.c.0.s8 %v179
    %v181 = vlaneseq
    %v182 = vshrl.u32 %v181, 7
    %v183 = vsub.s32 %v180, %v182
    %v184 = vrot.slane %v170, %v183
    %v185 = vcombine.low %v177, %v184
    %188 = vst [vmem:[#allocation5] sm:$0xff] %v168
    %189 = vst [vmem:[#allocation5 + $0x8] sm:$0xff] %v185
    // Predicated region
    $region10: #{tpu_custom_call.1} parent=1 // pred_check
      _
    $region11: #{tpu_custom_call.1} parent=1 // pred_check_branch
      %191 = sbr.rel (0) target = $region13
    $region12: #{tpu_custom_call.1} parent=1 // pred_region
      %s193 = ssub.s32 256, 256
      %194 = vsyncadd [#allocation4], %s193
      %s196 = sshll.u32 [#allocation5], 4
      %s197 = int_to_ptr.vmem [resolvable:$true] %s196
      %199 = dma.vmem_to_hbm [thread:$0]  %s197, 256, %s1, [#allocation4]
    $region13: #{tpu_custom_call.1} parent=1 // pred_fallthru
      _
    // Predicated region
    $region14: #{tpu_custom_call.1} parent=1 // pred_check
      _
    $region15: #{tpu_custom_call.1} parent=1 // pred_check_branch
      %201 = sbr.rel (0) target = $region17
    $region16: #{tpu_custom_call.1} parent=1 // pred_region
      %202 = dma.done [#allocation4], 256
    $region17: #{tpu_custom_call.1} parent=1 // pred_fallthru
      _
    %203 = vsyncpa [#allocation3], 1
    %204 = vsyncpa [#allocation4], 1

</llo_original>
